<compile_context>
chip_gen: v7x
topology: tpu7x:2x2x1
jax: 0.10.0
libtpu: 0.0.40
codegen_flags: <defaults>
</compile_context>

<pallas_src>
import jax
import jax.numpy as jnp
from jax import lax
from jax.experimental import pallas as pl
from jax.experimental.pallas import tpu as pltpu

LEAKY_SLOPE = 0.01   # torch.nn.LeakyReLU default negative_slope
BN_EPS = 1e-5        # nn.BatchNorm1d default eps


def _round_up(x, m):
    return ((x + m - 1) // m) * m


def _tpu_vmem_bytes():
    try:
        return int(pltpu.get_tpu_info().vmem_capacity_bytes)
    except Exception:
        return 64 << 20   # conservative (v7x per-core) fallback


def _pad_plan(in_f, out_f):
    """Static (N-independent) padded parameter shapes."""
    # Feature axis: lane-dense; 256-aligned above 128 so tn >= 256 is possible
    # (fills the 2x256 MXU columns on v6e/v7x; 128 stays optimal for tiny layers).
    out_pad = 128 if out_f <= 128 else _round_up(out_f, 256)
    # K axis: 128-aligned so x / W vector loads are unmasked and tile candidates
    # divide it exactly (no ragged last K tile).
    in_pad = _round_up(in_f, 128)
    return in_pad, out_pad


def _tile_plan(n, in_pad, out_pad, x_dtype, w_dtype, out_dtype):
    """Pick (tn, tk) that fit this chip's VMEM for this batch size."""
    vmem = _tpu_vmem_bytes()
    budget = int(vmem * 0.80)          # headroom for Mosaic-internal scratch
    two_tc = vmem <= (64 << 20)        # v7x heuristic: 64 MiB/TC, 2 TCs per chip

    x_it = jnp.dtype(x_dtype).itemsize
    w_it = jnp.dtype(w_dtype).itemsize
    o_it = jnp.dtype(out_dtype).itemsize
    needs_acc = jnp.dtype(out_dtype) != jnp.dtype(jnp.float32)

    tn_cands = [t for t in (1024, 512, 256, 128)
                if t <= out_pad and out_pad % t == 0]
    if two_tc and out_pad >= 256:
        # Keep >= 2 feature tiles so both TensorCores get work.
        tn_cands = [t for t in tn_cands if out_pad // t >= 2] or [128]

    tk_cands = ([in_pad] if in_pad <= 2048 else []) + \
               [t for t in (2048, 1024, 512, 256, 128)
                if t < in_pad and in_pad % t == 0]

    def footprint(tn, tk):
        fp = 2 * n * tk * x_it            # x block (double-buffered)
        fp += 2 * tk * tn * w_it          # W block
        fp += 2 * 2 * tn * 4              # packed gamma/beta block
        fp += 2 * n * tn * o_it           # output block
        if needs_acc and tk < in_pad:     # resident f32 accumulator (bf16 path)
            fp += n * tn * 4
        return fp

    chosen = None
    for tn in tn_cands:                   # prefer large tn: fewer x re-fetches
        for tk in tk_cands:               # then large tk: fewer grid steps
            if footprint(tn, tk) <= budget:
                chosen = (tn, tk)
                break
        if chosen is not None:
            break
    if chosen is None:
        # Even the smallest tiles exceed the budget (very large N).
        # TODO(synk): two-pass split (matmul + per-feature sum/sumsq written to
        # HBM, then a mem-bound normalize+LeakyReLU pass) to bound VMEM vs N.
        chosen = (tn_cands[-1], tk_cands[-1])

    tn, tk = chosen
    fp = footprint(tn, tk)
    vmem_limit = int(min(max(fp * 1.25 + (1 << 20), 32 << 20), vmem * 0.9))
    return tn, tk, vmem_limit


def prepare_dense_block_params(weight, bias, gamma, beta):
    """One-time (outside the hot path) parameter prep.

    Transposes the Linear weight to (in_f, out_f) and zero-pads both dims to
    tile-friendly shapes; packs gamma/beta into one (2, out_pad) f32 array.
    The Linear bias is intentionally dropped: training-mode BatchNorm subtracts
    the per-feature batch mean, so a constant bias cancels exactly in the
    forward output.  Padded feature columns have gamma=beta=0 and produce exact
    zeros, which are sliced off after the kernel.
    """
    del bias  # cancels under training-mode BN (forward output only)
    out_f, in_f = weight.shape
    in_pad, out_pad = _pad_plan(in_f, out_f)

    w_t = jnp.zeros((in_pad, out_pad), weight.dtype)
    w_t = w_t.at[:in_f, :out_f].set(weight.T)

    gb = jnp.zeros((2, out_pad), jnp.float32)
    gb = gb.at[0, :out_f].set(gamma.astype(jnp.float32))
    gb = gb.at[1, :out_f].set(beta.astype(jnp.float32))
    return w_t, gb


def _epilogue(y, gb_ref, o_ref):
    """BatchNorm (training-mode batch stats) + LeakyReLU over the (N, TN) slab."""
    n = y.shape[0]
    inv_n = 1.0 / float(n)
    gb = gb_ref[...]                                      # (2, TN) f32
    mean = jnp.sum(y, axis=0, keepdims=True) * inv_n      # (1, TN)
    d = y - mean
    var = jnp.sum(d * d, axis=0, keepdims=True) * inv_n   # biased, two-pass
    scale = gb[0:1, :] * lax.rsqrt(var + BN_EPS)          # gamma * rsqrt(var+eps)
    shift = gb[1:2, :] - mean * scale                     # beta  - mean*scale
    y_bn = y * scale + shift
    # LeakyReLU (0 < slope < 1): max(y, slope*y) == where(y>=0, y, slope*y)
    o_ref[...] = jnp.maximum(y_bn, LEAKY_SLOPE * y_bn).astype(o_ref.dtype)


def _make_kernel(single_k, acc_is_output):
    if single_k:
        def kernel(x_ref, w_ref, gb_ref, o_ref):
            y = jnp.dot(x_ref[...], w_ref[...],
                        preferred_element_type=jnp.float32)
            _epilogue(y, gb_ref, o_ref)
        return kernel

    def kernel(x_ref, w_ref, gb_ref, o_ref, *scratch):
        acc = o_ref if acc_is_output else scratch[0]
        k = pl.program_id(1)

        @pl.when(k == 0)
        def _():  # first K step: write directly (no zero-init + add)
            acc[...] = jnp.dot(x_ref[...], w_ref[...],
                               preferred_element_type=jnp.float32
                               ).astype(acc.dtype)

        @pl.when(k > 0)
        def _():
            acc[...] += jnp.dot(x_ref[...], w_ref[...],
                                preferred_element_type=jnp.float32
                                ).astype(acc.dtype)

        @pl.when(k == pl.num_programs(1) - 1)
        def _():
            _epilogue(acc[...].astype(jnp.float32), gb_ref, o_ref)

    return kernel


def dense_block(x, w_t, gb, out_features):
    """Hot path: LeakyReLU(BatchNorm1d_train(Linear(x))).
    x: (N, in_features); w_t/gb from prepare_dense_block_params.
    Returns (N, out_features) in x.dtype."""
    n, in_f = x.shape
    in_pad, out_pad = w_t.shape
    assert gb.shape == (2, out_pad), "params not prepared for this shape"

    if in_f != in_pad:
        # TODO(synk): fold this K-dim zero-pad into the caller's x layout so the
        # hot path does not pay an extra HBM copy of x.
        x = jnp.pad(x, ((0, 0), (0, in_pad - in_f)))

    tn, tk, vmem_limit = _tile_plan(n, in_pad, out_pad, x.dtype, w_t.dtype, x.dtype)
    grid = (out_pad // tn, in_pad // tk)
    single_k = grid[1] == 1
    acc_is_output = jnp.dtype(x.dtype) == jnp.dtype(jnp.float32)
    needs_scratch = (not single_k) and (not acc_is_output)

    kernel = _make_kernel(single_k, acc_is_output)
    scratch_shapes = [pltpu.VMEM((n, tn), jnp.float32)] if needs_scratch else []

    out = pl.pallas_call(
        kernel,
        out_shape=jax.ShapeDtypeStruct((n, out_pad), x.dtype),
        grid_spec=pltpu.PrefetchScalarGridSpec(
            num_scalar_prefetch=0,
            grid=grid,
            in_specs=[
                pl.BlockSpec((n, tk), lambda j, k: (0, k)),    # x
                pl.BlockSpec((tk, tn), lambda j, k: (k, j)),   # W^T (pre-transposed)
                pl.BlockSpec((2, tn), lambda j, k: (0, j)),    # packed gamma/beta
            ],
            out_specs=pl.BlockSpec((n, tn), lambda j, k: (0, j)),
            scratch_shapes=scratch_shapes,
        ),
        compiler_params=pltpu.CompilerParams(
            dimension_semantics=("parallel", "arbitrary"),
            vmem_limit_bytes=vmem_limit,
        ),
    )(x, w_t, gb)

    return out[:, :out_features]


def dense_block_ref(x, weight, bias, gamma, beta):
    """Pure-JAX reference mirroring torch semantics (training-mode BN)."""
    y = x @ weight.T + bias
    mean = jnp.mean(y, axis=0, keepdims=True)
    var = jnp.mean((y - mean) ** 2, axis=0, keepdims=True)
    y_bn = (y - mean) / jnp.sqrt(var + BN_EPS) * gamma + beta
    return jnp.where(y_bn >= 0, y_bn, LEAKY_SLOPE * y_bn)


if __name__ == "__main__":
    N, IN_F, OUT_F = 8, 32, 64

    key = jax.random.PRNGKey(0)
    kx, kw, kb, kg, kbe = jax.random.split(key, 5)

    x = jax.random.normal(kx, (N, IN_F), dtype=jnp.float32)
    bound = 1.0 / (IN_F ** 0.5)
    weight = jax.random.uniform(kw, (OUT_F, IN_F), minval=-bound, maxval=bound,
                                dtype=jnp.float32)
    bias = jax.random.uniform(kb, (OUT_F,), minval=-bound, maxval=bound,
                              dtype=jnp.float32)
    gamma = 1.0 + 0.1 * jax.random.normal(kg, (OUT_F,), dtype=jnp.float32)
    beta = 0.1 * jax.random.normal(kbe, (OUT_F,), dtype=jnp.float32)

    # One-time param prep (outside the hot path), then the kernel call.
    w_t, gb = prepare_dense_block_params(weight, bias, gamma, beta)
    out = dense_block(x, w_t, gb, OUT_F)
    out = jax.block_until_ready(out)

    ref = dense_block_ref(x, weight, bias, gamma, beta)
    assert out.shape == (N, OUT_F)
    assert jnp.allclose(out, ref, atol=1e-4, rtol=1e-4), "mismatch vs reference"

    # TODO(synk): BatchNorm1d running_mean/running_var buffer updates (a training
    # side effect, not part of the forward output) are not emitted; note they
    # would depend on the Linear bias, which the forward kernel drops.
    print("KERNEL_OK")
</pallas_src>

<mosaic_0001>
module attributes {stable_mosaic.version = 11 : i64} {
  func.func @kernel(%arg0: i32, %arg1: i32, %arg2: memref<8x128xf32, #tpu.memory_space<vmem>>, %arg3: memref<128x128xf32, #tpu.memory_space<vmem>>, %arg4: memref<2x128xf32, #tpu.memory_space<vmem>>, %arg5: memref<8x128xf32, #tpu.memory_space<vmem>>) attributes {dimension_semantics = [#tpu.dimension_semantics<parallel>, #tpu.dimension_semantics<arbitrary>], iteration_bounds = array<i64: 1, 1>, scalar_prefetch = 0 : i64, scratch_operands = 0 : i64, tpu.core_type = #tpu.core_type<tc>, window_params = [{transform_indices = @transform_0, window_bounds = array<i64: 8, 128>}, {transform_indices = @transform_1, window_bounds = array<i64: 128, 128>}, {transform_indices = @transform_2, window_bounds = array<i64: 2, 128>}, {transform_indices = @transform_3, window_bounds = array<i64: 8, 128>}]} {
    %c0 = arith.constant 0 : index
    %c0_0 = arith.constant 0 : index
    %0 = vector.load %arg2[%c0, %c0_0] : memref<8x128xf32, #tpu.memory_space<vmem>>, vector<8x128xf32>
    %c0_1 = arith.constant 0 : index
    %c0_2 = arith.constant 0 : index
    %1 = vector.load %arg3[%c0_1, %c0_2] : memref<128x128xf32, #tpu.memory_space<vmem>>, vector<128x128xf32>
    %cst = arith.constant dense<0.000000e+00> : vector<8x128xf32>
    %2 = tpu.matmul %0, %1, %cst {dimension_numbers = #tpu.dot_dimension_numbers<[1], [0], [0], [1], [0, 0, 1, 1], [], []>} : vector<8x128xf32>, vector<128x128xf32>, vector<8x128xf32> -> vector<8x128xf32>
    %c0_3 = arith.constant 0 : index
    %c0_4 = arith.constant 0 : index
    %3 = vector.load %arg4[%c0_3, %c0_4] : memref<2x128xf32, #tpu.memory_space<vmem>>, vector<2x128xf32>
    %cst_5 = arith.constant dense<0.000000e+00> : vector<128xf32>
    %4 = vector.multi_reduction <add>, %2, %cst_5 [0] : vector<8x128xf32> to vector<128xf32>
    %5 = vector.shape_cast %4 : vector<128xf32> to vector<1x128xf32>
    %cst_6 = arith.constant 1.250000e-01 : f32
    %6 = vector.broadcast %cst_6 : f32 to vector<1x128xf32>
    %7 = arith.mulf %5, %6 : vector<1x128xf32>
    %8 = vector.broadcast %7 : vector<1x128xf32> to vector<8x128xf32>
    %9 = arith.subf %2, %8 : vector<8x128xf32>
    %10 = arith.mulf %9, %9 : vector<8x128xf32>
    %cst_7 = arith.constant dense<0.000000e+00> : vector<128xf32>
    %11 = vector.multi_reduction <add>, %10, %cst_7 [0] : vector<8x128xf32> to vector<128xf32>
    %12 = vector.shape_cast %11 : vector<128xf32> to vector<1x128xf32>
    %cst_8 = arith.constant 1.250000e-01 : f32
    %13 = vector.broadcast %cst_8 : f32 to vector<1x128xf32>
    %14 = arith.mulf %12, %13 : vector<1x128xf32>
    %15 = vector.extract_strided_slice %3 {offsets = [0, 0], sizes = [1, 128], strides = [1, 1]} : vector<2x128xf32> to vector<1x128xf32>
    %cst_9 = arith.constant 9.99999974E-6 : f32
    %16 = vector.broadcast %cst_9 : f32 to vector<1x128xf32>
    %17 = arith.addf %14, %16 : vector<1x128xf32>
    %18 = math.rsqrt %17 : vector<1x128xf32>
    %19 = arith.mulf %15, %18 : vector<1x128xf32>
    %20 = vector.extract_strided_slice %3 {offsets = [1, 0], sizes = [1, 128], strides = [1, 1]} : vector<2x128xf32> to vector<1x128xf32>
    %21 = arith.mulf %7, %19 : vector<1x128xf32>
    %22 = arith.subf %20, %21 : vector<1x128xf32>
    %23 = vector.broadcast %19 : vector<1x128xf32> to vector<8x128xf32>
    %24 = arith.mulf %2, %23 : vector<8x128xf32>
    %25 = vector.broadcast %22 : vector<1x128xf32> to vector<8x128xf32>
    %26 = arith.addf %24, %25 : vector<8x128xf32>
    %cst_10 = arith.constant 0.00999999977 : f32
    %27 = vector.broadcast %cst_10 : f32 to vector<8x128xf32>
    %28 = arith.mulf %27, %26 : vector<8x128xf32>
    %29 = arith.maximumf %26, %28 : vector<8x128xf32>
    %c0_11 = arith.constant 0 : index
    %c0_12 = arith.constant 0 : index
    %30 = vector.load %arg5[%c0_11, %c0_12] : memref<8x128xf32, #tpu.memory_space<vmem>>, vector<8x128xf32>
    tpu.vector_store %arg5[%c0_11, %c0_12], %29 {strides = array<i32>} : memref<8x128xf32, #tpu.memory_space<vmem>>, vector<8x128xf32>,
    return
  }
  func.func @transform_0(%arg0: i32, %arg1: i32) -> (i32, i32) {
    %c0_i32 = arith.constant 0 : i32
    %c0_i32_0 = arith.constant 0 : i32
    return %c0_i32, %arg1 : i32, i32
  }
  func.func @transform_1(%arg0: i32, %arg1: i32) -> (i32, i32) {
    %c0_i32 = arith.constant 0 : i32
    return %arg1, %arg0 : i32, i32
  }
  func.func @transform_2(%arg0: i32, %arg1: i32) -> (i32, i32) {
    %c0_i32 = arith.constant 0 : i32
    %c0_i32_0 = arith.constant 0 : i32
    return %c0_i32, %arg0 : i32, i32
  }
  func.func @transform_3(%arg0: i32, %arg1: i32) -> (i32, i32) {
    %c0_i32 = arith.constant 0 : i32
    %c0_i32_0 = arith.constant 0 : i32
    return %c0_i32, %arg0 : i32, i32
  }
}

</mosaic_0001>

<llo_original>
// kernel: tpu_custom_call.1
$region0: #{tpu_custom_call.1}
  #allocation0 [shape = 'u32[]', space=smem, size = 0x4, offset = 0x4, fixed_abs, tag = 'smem constant byte address 0x4 - core index']
  #allocation1 [shape = 'u32[144,128]{1,0:T(1,128)}', space=vmem, size = 0x12000, scoped, tag = 'internal scratch']
  %s0 = inlined_call_operand.hbm [shape: f32[8,128], index: 0, kind: input, shape index: {}]
  %s1 = inlined_call_operand.hbm [shape: f32[128,128], index: 1, kind: input, shape index: {}]
  %s2 = inlined_call_operand.vmem [shape: f32[2,128], index: 2, kind: input, shape index: {}]
  %s3 = inlined_call_operand.hbm [shape: f32[8,128], index: 3, kind: output, shape index: {}]
  %s4 = sld [smem:[#allocation0]]
  $region30: #{tpu_custom_call.1} parent=0
    _
  %s6 = ssub.s32 1, %s4
  %s7 = scalar_select 0, %s6, %s4
  $region1: #{tpu_custom_call.1} parent=0
    #allocation2 [shape = 'u8[4096]{0}', space=vmem, size = 0x1000, scoped, tag = 'input window, operand 0, single buffered']
    #allocation3 [shape = 's32[1]{0}', space=sflag, size = 0x4, scoped, tag = 'scoped memory for tpu_custom_call.1']
    #allocation4 [shape = 's32[1]{0}', space=sflag, size = 0x4, scoped, tag = 'scoped memory for tpu_custom_call.1']
    #allocation5 [shape = 'u8[65536]{0}', space=vmem, size = 0x10000, scoped, tag = 'input window, operand 1, single buffered']
    #allocation6 [shape = 's32[1]{0}', space=sflag, size = 0x4, scoped, tag = 'scoped memory for tpu_custom_call.1']
    #allocation7 [shape = 'u8[4096]{0}', space=vmem, size = 0x1000, scoped, tag = 'output window, operand 0, single buffered']
    %8 = vsyncpa [#allocation3], 0
    %9 = vsyncpa [#allocation6], 0
    %10 = vsyncpa [#allocation4], 0
    // Predicated region
    $region2: #{tpu_custom_call.1} parent=1 // pred_check
      _
    $region3: #{tpu_custom_call.1} parent=1 // pred_check_branch
      %12 = sbr.rel (0) target = $region5
    $region4: #{tpu_custom_call.1} parent=1 // pred_region
      %s14 = ssub.s32 128, 128
      %15 = vsyncadd [#allocation3], %s14
      %s17 = sshll.u32 [#allocation2], 4
      %s18 = int_to_ptr.vmem [resolvable:$true] %s17
      %20 = dma.hbm_to_vmem [thread:$0]  %s0, 128, %s18, [#allocation3]
    $region5: #{tpu_custom_call.1} parent=1 // pred_fallthru
      _
    // Predicated region
    $region6: #{tpu_custom_call.1} parent=1 // pred_check
      _
    $region7: #{tpu_custom_call.1} parent=1 // pred_check_branch
      %22 = sbr.rel (0) target = $region9
    $region8: #{tpu_custom_call.1} parent=1 // pred_region
      %s24 = ssub.s32 2048, 2048
      %25 = vsyncadd [#allocation6], %s24
      %s26 = sshll.u32 [#allocation5], 4
      %s27 = int_to_ptr.vmem [resolvable:$true] %s26
      %32 = dma.hbm_to_vmem [thread:$0]  %s1, 2048, %s27, [#allocation6], 128, 128, 8
    $region9: #{tpu_custom_call.1} parent=1 // pred_fallthru
      _
    // Predicated region
    $region10: #{tpu_custom_call.1} parent=1 // pred_check
      _
    $region11: #{tpu_custom_call.1} parent=1 // pred_check_branch
      %34 = sbr.rel (0) target = $region13
    $region12: #{tpu_custom_call.1} parent=1 // pred_region
      _
    $region13: #{tpu_custom_call.1} parent=1 // pred_fallthru
      _
    // Predicated region
    $region14: #{tpu_custom_call.1} parent=1 // pred_check
      _
    $region15: #{tpu_custom_call.1} parent=1 // pred_check_branch
      %36 = sbr.rel (0) target = $region17
    $region16: #{tpu_custom_call.1} parent=1 // pred_region
      %37 = dma.done [#allocation3], 128
    $region17: #{tpu_custom_call.1} parent=1 // pred_fallthru
      _
    // Predicated region
    $region18: #{tpu_custom_call.1} parent=1 // pred_check
      _
    $region19: #{tpu_custom_call.1} parent=1 // pred_check_branch
      %39 = sbr.rel (0) target = $region21
    $region20: #{tpu_custom_call.1} parent=1 // pred_region
      %40 = dma.done [#allocation6], 2048
    $region21: #{tpu_custom_call.1} parent=1 // pred_fallthru
      _
    %v41 = vld [vmem:[#allocation2] sm:$0xff]
    %v42 = vld [vmem:[#allocation5] sm:$0xff]
    %v43 = vld [vmem:[#allocation5 + $0x8] sm:$0xff]
    %v44 = vld [vmem:[#allocation5 + $0x10] sm:$0xff]
    %v45 = vld [vmem:[#allocation5 + $0x18] sm:$0xff]
    %v46 = vld [vmem:[#allocation5 + $0x20] sm:$0xff]
    %v47 = vld [vmem:[#allocation5 + $0x28] sm:$0xff]
    %v48 = vld [vmem:[#allocation5 + $0x30] sm:$0xff]
    %v49 = vld [vmem:[#allocation5 + $0x38] sm:$0xff]
    %v50 = vld [vmem:[#allocation5 + $0x40] sm:$0xff]
    %v51 = vld [vmem:[#allocation5 + $0x48] sm:$0xff]
    %v52 = vld [vmem:[#allocation5 + $0x50] sm:$0xff]
    %v53 = vld [vmem:[#allocation5 + $0x58] sm:$0xff]
    %v54 = vld [vmem:[#allocation5 + $0x60] sm:$0xff]
    %v55 = vld [vmem:[#allocation5 + $0x68] sm:$0xff]
    %v56 = vld [vmem:[#allocation5 + $0x70] sm:$0xff]
    %v57 = vld [vmem:[#allocation5 + $0x78] sm:$0xff]
    %58 = vmatprep.subr.mxu0 0.0
    %59 = vmatpush1.msra.mxu0 %v42
    %60 = vmatprep.subr.mxu0 0.0
    %61 = vmatpush1.msra.mxu0 %v43
    %62 = vmatprep.subr.mxu0 0.0
    %63 = vmatpush1.msra.mxu0 %v44
    %64 = vmatprep.subr.mxu0 0.0
    %65 = vmatpush1.msra.mxu0 %v45
    %66 = vmatprep.subr.mxu0 0.0
    %67 = vmatpush1.msra.mxu0 %v46
    %68 = vmatprep.subr.mxu0 0.0
    %69 = vmatpush1.msra.mxu0 %v47
    %70 = vmatprep.subr.mxu0 0.0
    %71 = vmatpush1.msra.mxu0 %v48
    %72 = vmatprep.subr.mxu0 0.0
    %73 = vmatpush1.msra.mxu0 %v49
    %74 = vmatprep.subr.mxu0 0.0
    %75 = vmatpush1.msra.mxu0 %v50
    %76 = vmatprep.subr.mxu0 0.0
    %77 = vmatpush1.msra.mxu0 %v51
    %78 = vmatprep.subr.mxu0 0.0
    %79 = vmatpush1.msra.mxu0 %v52
    %80 = vmatprep.subr.mxu0 0.0
    %81 = vmatpush1.msra.mxu0 %v53
    %82 = vmatprep.subr.mxu0 0.0
    %83 = vmatpush1.msra.mxu0 %v54
    %84 = vmatprep.subr.mxu0 0.0
    %85 = vmatpush1.msra.mxu0 %v55
    %86 = vmatprep.subr.mxu0 0.0
    %87 = vmatpush1.msra.mxu0 %v56
    %88 = vmatprep.subr.mxu0 0.0
    %89 = vmatpush1.msra.mxu0 %v57
    %90 = vmatprep.subr.mxu0 0.0
    %91 = vmatpush1.msra.mxu0 0.0
    %92 = vmatprep.subr.mxu0 0.0
    %93 = vmatpush1.msra.mxu0 0.0
    %94 = vmatprep.subr.mxu0 0.0
    %95 = vmatpush1.msra.mxu0 0.0
    %96 = vmatprep.subr.mxu0 0.0
    %97 = vmatpush1.msra.mxu0 0.0
    %98 = vmatprep.subr.mxu0 0.0
    %99 = vmatpush1.msra.mxu0 0.0
    %100 = vmatprep.subr.mxu0 0.0
    %101 = vmatpush1.msra.mxu0 0.0
    %102 = vmatprep.subr.mxu0 0.0
    %103 = vmatpush1.msra.mxu0 0.0
    %104 = vmatprep.subr.mxu0 0.0
    %105 = vmatpush1.msra.mxu0 0.0
    %106 = vmatprep.subr.mxu0 0.0
    %107 = vmatpush1.msra.mxu0 0.0
    %108 = vmatprep.subr.mxu0 0.0
    %109 = vmatpush1.msra.mxu0 0.0
    %110 = vmatprep.subr.mxu0 0.0
    %111 = vmatpush1.msra.mxu0 0.0
    %112 = vmatprep.subr.mxu0 0.0
    %113 = vmatpush1.msra.mxu0 0.0
    %114 = vmatprep.subr.mxu0 0.0
    %115 = vmatpush1.msra.mxu0 0.0
    %116 = vmatprep.subr.mxu0 0.0
    %117 = vmatpush1.msra.mxu0 0.0
    %118 = vmatprep.subr.mxu0 0.0
    %119 = vmatpush1.msra.mxu0 0.0
    %120 = vmatprep.subr.mxu0 0.0
    %121 = vmatpush1.msra.mxu0 0.0
    %122 = vmatprep.mubr.f32.mxu0 0.0
    %123 = vmatmul.mubr.f32.gmra.mrb[0].mxu0 %v41
    %v124 = vpop.f32.mrb[0].mxu0
    %v125 = vadd.f32 0.0, %v124
    %v126 = vpop.f32.mrb[0].mxu0
    %127 = vdwg.mxu0
    %v128 = vld [vmem:[%s2] sm:$0x3]
    %v129 = vrot.slane %v125, 4
    %v130 = vadd.f32 %v125, %v129
    %v131 = vrot.slane %v130, 2
    %v132 = vadd.f32 %v130, %v131
    %v133 = vrot.slane %v132, 1
    %v134 = vadd.f32 %v132, %v133
    %v135 = vmul.f32 %v134, 0.125
    %v136 = vsub.f32 %v125, %v135
    %v137 = vmul.f32 %v136, %v136
    %v138 = vrot.slane %v137, 4
    %v139 = vadd.f32 %v137, %v138
    %v140 = vrot.slane %v139, 2
    %v141 = vadd.f32 %v139, %v140
    %v142 = vrot.slane %v141, 1
    %v143 = vadd.f32 %v141, %v142
    %v144 = vmul.f32 %v143, 0.125
    %v145 = vadd.f32 %v144, 1e-05
    %v146 = vrsqrt.pop %v145
    %v147 = vmul.f32 %v128, %v146
    %v148 = vmul.f32 %v135, %v147
    %v150 = vrot.slane %v148, 7
    %v152 = vsub.f32 %v128, %v150
    %v153 = vlaneseq
    %v154 = vshrl.u32 %v153, 7
    %v155 = vsub.s32 0, %v154
    %v156 = vrot.slane %v147, %v155
    %v157 = vmul.f32 %v125, %v156
    %v158 = vlaneseq
    %v159 = vshrl.u32 %v158, 7
    %v160 = vsub.s32 1, %v159
    %v161 = vrot.slane %v152, %v160
    %v162 = vadd.f32 %v157, %v161
    %v163 = vmul.f32 %v162, 0.01
    %v164 = vmax.f32 %v162, %v163
    %165 = vst [vmem:[#allocation7] sm:$0xff] %v164
    // Predicated region
    $region22: #{tpu_custom_call.1} parent=1 // pred_check
      _
    $region23: #{tpu_custom_call.1} parent=1 // pred_check_branch
      %167 = sbr.rel (0) target = $region25
    $region24: #{tpu_custom_call.1} parent=1 // pred_region
      %s169 = ssub.s32 128, 128
      %170 = vsyncadd [#allocation4], %s169
      %s172 = sshll.u32 [#allocation7], 4
      %s173 = int_to_ptr.vmem [resolvable:$true] %s172
      %175 = dma.vmem_to_hbm [thread:$0]  %s173, 128, %s3, [#allocation4]
    $region25: #{tpu_custom_call.1} parent=1 // pred_fallthru
      _
    // Predicated region
    $region26: #{tpu_custom_call.1} parent=1 // pred_check
      _
    $region27: #{tpu_custom_call.1} parent=1 // pred_check_branch
      %177 = sbr.rel (0) target = $region29
    $region28: #{tpu_custom_call.1} parent=1 // pred_region
      %178 = dma.done [#allocation4], 128
    $region29: #{tpu_custom_call.1} parent=1 // pred_fallthru
      _
    %179 = vsyncpa [#allocation3], 1
    %180 = vsyncpa [#allocation6], 1
    %181 = vsyncpa [#allocation4], 1

</llo_original>
